<compile_context>
chip_gen: v5e
topology: v5e:2x2
jax: 0.10.0
libtpu: 0.0.40
codegen_flags: <defaults>
</compile_context>

<pallas_src>
import jax
import jax.numpy as jnp
from jax.experimental import pallas as pl
from jax.experimental.pallas import tpu as pltpu


def _where_kernel(cond_ref, then_ref, other_ref, out_ref):
    # One VPU select per vreg over the whole VMEM tile.
    out_ref[...] = jnp.where(cond_ref[...], then_ref[...], other_ref[...])


_PAD_MULTIPLE = 1024                      # 8 sublanes * 128 lanes
_LANE_CANDIDATES = (512, 256, 128)
_TARGET_BLOCK_BYTES = 4 * 1024 * 1024     # per then/other/out block (grid path)
_GRIDLESS_MAX_BYTES = 512 * 1024          # <= this per value operand -> no grid
_MIN_GRID_STEPS = 4                       # medium sizes still get pipelining
_VMEM_LIMIT_BYTES = 48 * 1024 * 1024      # < v7x 64 MiB physical; explicit for v5e


def _choose_lane(padded_total):
    """Pick the widest lane (multiple of 128) that divides padded_total,
    preferring rows % 32 == 0 (keeps the 1-byte cond stream on packed (32,128)
    tiles), then rows % 8 == 0.  padded_total is a multiple of 1024, so
    lane=128 with rows % 8 == 0 always exists."""
    for row_pref in (32, 8):
        for lane in _LANE_CANDIDATES:
            if padded_total % lane == 0 and (padded_total // lane) % row_pref == 0:
                return lane
    return 128  # unreachable given padding, but safe


def pallas_where(cond, then, other):
    """torch.Tensor.where semantics for same-shaped operands (no broadcasting,
    matching the test module)."""
    assert cond.shape == then.shape == other.shape, (
        "pallas_where: broadcasting not supported; shapes must match")
    assert then.dtype == other.dtype, (
        "pallas_where: then/other dtypes must match")

    orig_shape = then.shape
    total = int(then.size)
    if total == 0:
        # Degenerate empty input: nothing to launch.
        return jnp.where(cond, then, other)

    itemsize = jnp.dtype(then.dtype).itemsize

    cond_f = cond.reshape(-1)
    then_f = then.reshape(-1)
    other_f = other.reshape(-1)

    # Pad to a multiple of 8x128 so we always get a lane-dense slab with
    # rows % 8 == 0 (unmasked stores, no 1-sublane vregs). Padding region is
    # computed but sliced off before returning.
    pad = (-total) % _PAD_MULTIPLE
    if pad:
        cond_f = jnp.pad(cond_f, (0, pad))
        then_f = jnp.pad(then_f, (0, pad))
        other_f = jnp.pad(other_f, (0, pad))
    padded_total = total + pad

    lane = _choose_lane(padded_total)
    rows = padded_total // lane
    shape2d = (rows, lane)

    cond2d = cond_f.reshape(shape2d)
    then2d = then_f.reshape(shape2d)
    other2d = other_f.reshape(shape2d)
    out_shape = jax.ShapeDtypeStruct(shape2d, then.dtype)

    if total * itemsize <= _GRIDLESS_MAX_BYTES:
        # Small input: single full-array block, gridless. Fixed call + DMA
        # overhead dominates; nothing to pipeline.
        out2d = pl.pallas_call(
            _where_kernel,
            out_shape=out_shape,
            in_specs=[pl.BlockSpec(shape2d, lambda: (0, 0))] * 3,
            out_specs=pl.BlockSpec(shape2d, lambda: (0, 0)),
            compiler_params=pltpu.CompilerParams(
                vmem_limit_bytes=_VMEM_LIMIT_BYTES),
        )(cond2d, then2d, other2d)
    else:
        # Grid path: keep per-operand block bytes roughly constant (~4 MiB)
        # whatever lane width we ended up with, but cap the block so there are
        # at least _MIN_GRID_STEPS steps (prefetch/writeback overlap, and the
        # parallel axis can be sharded across v7x's two TensorCores).
        rows_block = max(8, (_TARGET_BLOCK_BYTES // (lane * itemsize)) // 8 * 8)
        rows_cap = max(8, (pl.cdiv(rows, _MIN_GRID_STEPS) // 8) * 8)
        rows_block = min(rows_block, rows_cap, rows)
        blk = (rows_block, lane)
        grid = (pl.cdiv(rows, rows_block),)
        idx = lambda i: (i, 0)
        out2d = pl.pallas_call(
            _where_kernel,
            out_shape=out_shape,
            grid=grid,
            in_specs=[pl.BlockSpec(blk, idx)] * 3,
            out_specs=pl.BlockSpec(blk, idx),
            compiler_params=pltpu.CompilerParams(
                dimension_semantics=("parallel",),
                vmem_limit_bytes=_VMEM_LIMIT_BYTES),
        )(cond2d, then2d, other2d)

    out_flat = out2d.reshape(-1)
    if pad:
        out_flat = out_flat[:total]
    return out_flat.reshape(orig_shape)


if __name__ == "__main__":
    key = jax.random.PRNGKey(0)
    k1, k2, k3, k4, k5, k6 = jax.random.split(key, 6)

    # --- small shape from the test module (gridless path, no padding) ---
    shape = (2, 4, 16, 16)  # NCHW
    then = jax.random.normal(k1, shape, dtype=jnp.float32)
    other = jax.random.normal(k2, shape, dtype=jnp.float32)
    cond = jax.random.uniform(k3, shape) > 0.5  # bool condition

    out = pallas_where(cond, then, other)
    jax.block_until_ready(out)
    ref = jnp.where(cond, then, other)
    assert out.shape == shape and out.dtype == then.dtype
    assert bool(jnp.array_equal(out, ref))

    # --- awkward medium shape (exercises padding + row-grid pipelined path) ---
    med_shape = (4, 4, 127, 129)  # 262128 elems (not a multiple of 1024)
    then_m = jax.random.normal(k4, med_shape, dtype=jnp.float32)
    other_m = jax.random.normal(k5, med_shape, dtype=jnp.float32)
    cond_m = jax.random.uniform(k6, med_shape) > 0.5

    out_m = pallas_where(cond_m, then_m, other_m)
    jax.block_until_ready(out_m)
    ref_m = jnp.where(cond_m, then_m, other_m)
    assert out_m.shape == med_shape and out_m.dtype == then_m.dtype
    assert bool(jnp.array_equal(out_m, ref_m))

    print("KERNEL_OK")
</pallas_src>

<mosaic_0001>
module attributes {stable_mosaic.version = 11 : i64} {
  func.func @_where_kernel(%arg0: memref<8x256xi32, #tpu.memory_space<vmem>>, %arg1: memref<8x256xf32, #tpu.memory_space<vmem>>, %arg2: memref<8x256xf32, #tpu.memory_space<vmem>>, %arg3: memref<8x256xf32, #tpu.memory_space<vmem>>) attributes {dimension_semantics = [], scalar_prefetch = 0 : i64, scratch_operands = 0 : i64, tpu.core_type = #tpu.core_type<tc>} {
    %c0 = arith.constant 0 : index
    %c0_0 = arith.constant 0 : index
    %0 = vector.load %arg0[%c0, %c0_0] : memref<8x256xi32, #tpu.memory_space<vmem>>, vector<8x256xi32>
    %cst = arith.constant dense<0> : vector<8x256xi32>
    %1 = arith.cmpi ne, %0, %cst : vector<8x256xi32>
    %c0_1 = arith.constant 0 : index
    %c0_2 = arith.constant 0 : index
    %2 = vector.load %arg1[%c0_1, %c0_2] : memref<8x256xf32, #tpu.memory_space<vmem>>, vector<8x256xf32>
    %c0_3 = arith.constant 0 : index
    %c0_4 = arith.constant 0 : index
    %3 = vector.load %arg2[%c0_3, %c0_4] : memref<8x256xf32, #tpu.memory_space<vmem>>, vector<8x256xf32>
    %4 = arith.select %1, %2, %3 : vector<8x256xi1>, vector<8x256xf32>
    %c0_5 = arith.constant 0 : index
    %c0_6 = arith.constant 0 : index
    %5 = vector.load %arg3[%c0_5, %c0_6] : memref<8x256xf32, #tpu.memory_space<vmem>>, vector<8x256xf32>
    tpu.vector_store %arg3[%c0_5, %c0_6], %4 {strides = array<i32>} : memref<8x256xf32, #tpu.memory_space<vmem>>, vector<8x256xf32>,
    return
  }
}

</mosaic_0001>

<llo_original>
// kernel: tpu_custom_call.1
$region0: #{tpu_custom_call.1}
  #allocation0 [shape = 'u32[]', space=smem, size = 0x4, offset = 0x4, fixed_abs, tag = 'smem constant byte address 0x4 - core index']
  #allocation1 [shape = 'u32[72,128]{1,0:T(1,128)}', space=vmem, size = 0x9000, scoped, tag = 'internal scratch']
  %s0 = inlined_call_operand.vmem [shape: s32[8,256], index: 0, kind: input, shape index: {}]
  %s1 = inlined_call_operand.vmem [shape: f32[8,256], index: 1, kind: input, shape index: {}]
  %s2 = inlined_call_operand.hbm [shape: f32[8,256], index: 2, kind: input, shape index: {}]
  %s3 = inlined_call_operand.hbm [shape: f32[8,256], index: 3, kind: output, shape index: {}]
  %s4 = sld [smem:[#allocation0]]
  $region26: #{tpu_custom_call.1} parent=0
    _
  %s6 = ssub.s32 1, %s4
  %s7 = scalar_select 0, %s6, %s4
  $region1: #{tpu_custom_call.1} parent=0
    #allocation2 [shape = 'u8[8192]{0}', space=vmem, size = 0x2000, scoped, tag = 'input window, operand 2, single buffered']
    #allocation3 [shape = 's32[1]{0}', space=sflag, size = 0x4, scoped, tag = 'scoped memory for tpu_custom_call.1']
    #allocation4 [shape = 's32[1]{0}', space=sflag, size = 0x4, scoped, tag = 'scoped memory for tpu_custom_call.1']
    #allocation5 [shape = 'u8[8192]{0}', space=vmem, size = 0x2000, scoped, tag = 'output window, operand 0, single buffered']
    %8 = vsyncpa [#allocation3], 0
    %9 = vsyncpa [#allocation4], 0
    // Predicated region
    $region2: #{tpu_custom_call.1} parent=1 // pred_check
      _
    $region3: #{tpu_custom_call.1} parent=1 // pred_check_branch
      %11 = sbr.rel (0) target = $region5
    $region4: #{tpu_custom_call.1} parent=1 // pred_region
      _
    $region5: #{tpu_custom_call.1} parent=1 // pred_fallthru
      _
    // Predicated region
    $region6: #{tpu_custom_call.1} parent=1 // pred_check
      _
    $region7: #{tpu_custom_call.1} parent=1 // pred_check_branch
      %13 = sbr.rel (0) target = $region9
    $region8: #{tpu_custom_call.1} parent=1 // pred_region
      _
    $region9: #{tpu_custom_call.1} parent=1 // pred_fallthru
      _
    // Predicated region
    $region10: #{tpu_custom_call.1} parent=1 // pred_check
      _
    $region11: #{tpu_custom_call.1} parent=1 // pred_check_branch
      %15 = sbr.rel (0) target = $region13
    $region12: #{tpu_custom_call.1} parent=1 // pred_region
      %17 = vsyncadd [#allocation3], 0
      %s19 = sshll.u32 %s2, 4
      %s20 = int_to_ptr.hbm [resolvable:$true] %s19
      %s21 = sshll.u32 [#allocation2], 4
      %s22 = int_to_ptr.vmem [resolvable:$true] %s21
      %24 = dma.hbm_to_vmem [thread:$0]  %s20, 256, %s22, [#allocation3]
    $region13: #{tpu_custom_call.1} parent=1 // pred_fallthru
      _
    // Predicated region
    $region14: #{tpu_custom_call.1} parent=1 // pred_check
      _
    $region15: #{tpu_custom_call.1} parent=1 // pred_check_branch
      %26 = sbr.rel (0) target = $region17
    $region16: #{tpu_custom_call.1} parent=1 // pred_region
      %28 = dma.done [#allocation3], 256
    $region17: #{tpu_custom_call.1} parent=1 // pred_fallthru
      _
    %v29 = vld [vmem:[%s0] sm:$0xff]
    %v30 = vld [vmem:[%s0 + $0x8] sm:$0xff]
    %vm31 = vcmp.ne.s32.totalorder %v29, 0
    %vm32 = vcmp.ne.s32.totalorder %v30, 0
    %v33 = vld [vmem:[%s1] sm:$0xff]
    %v34 = vld [vmem:[%s1 + $0x8] sm:$0xff]
    %v35 = vld [vmem:[#allocation2] sm:$0xff]
    %v36 = vld [vmem:[#allocation2 + $0x8] sm:$0xff]
    %v37 = vsel %vm31, %v33, %v35
    %v38 = vsel %vm32, %v34, %v36
    %39 = vst [vmem:[#allocation5] sm:$0xff] %v37
    %40 = vst [vmem:[#allocation5 + $0x8] sm:$0xff] %v38
    // Predicated region
    $region18: #{tpu_custom_call.1} parent=1 // pred_check
      _
    $region19: #{tpu_custom_call.1} parent=1 // pred_check_branch
      %42 = sbr.rel (0) target = $region21
    $region20: #{tpu_custom_call.1} parent=1 // pred_region
      %44 = vsyncadd [#allocation4], 0
      %s46 = sshll.u32 [#allocation5], 4
      %s47 = int_to_ptr.vmem [resolvable:$true] %s46
      %s48 = sshll.u32 %s3, 4
      %s49 = int_to_ptr.hbm [resolvable:$true] %s48
      %51 = dma.vmem_to_hbm [thread:$0]  %s47, 256, %s49, [#allocation4]
    $region21: #{tpu_custom_call.1} parent=1 // pred_fallthru
      _
    // Predicated region
    $region22: #{tpu_custom_call.1} parent=1 // pred_check
      _
    $region23: #{tpu_custom_call.1} parent=1 // pred_check_branch
      %53 = sbr.rel (0) target = $region25
    $region24: #{tpu_custom_call.1} parent=1 // pred_region
      %55 = dma.done [#allocation4], 256
    $region25: #{tpu_custom_call.1} parent=1 // pred_fallthru
      _
    %56 = vsyncpa [#allocation3], 1
    %57 = vsyncpa [#allocation4], 1

</llo_original>
